<compile_context>
chip_gen: v5e
topology: v5e:2x2
jax: 0.10.0
libtpu: 0.0.40
codegen_flags: <defaults>
</compile_context>

<pallas_src>
import jax
import jax.numpy as jnp
from jax.experimental import pallas as pl
from jax.experimental.pallas import tpu as pltpu


def _global_attention_kernel(alpha):
    def kernel(x_ref, w_ref, b_ref, a_ref, out_ref):
        TB, S, H = x_ref.shape

        # Linear: flatten (TB, S) into the MXU M dimension. bf16 operands,
        # f32 accumulation. w_ref is already transposed to (in, out) and bf16.
        x2 = x_ref[...].reshape(TB * S, H).astype(jnp.bfloat16)          # (TB*S, H)
        w = w_ref[...]                                                   # (H, H) bf16
        b = b_ref[...].astype(jnp.float32)                               # (1, H)
        h2 = jnp.dot(x2, w, preferred_element_type=jnp.float32) + b      # (TB*S, H) f32
        h = h2.reshape(TB, S, H)                                         # (TB, S, H) f32

        # e[b, s] = leakyrelu(sum_h h[b, s, h] * a[h])  — VPU mul + lane reduce.
        a = a_ref[...].astype(jnp.float32)                               # (1, H)
        e = jnp.sum(h * a, axis=-1)                                      # (TB, S)
        e = jnp.where(e > 0, e, alpha * e)                               # LeakyReLU

        # Softmax over the sequence (last axis, lane-major).
        m = jnp.max(e, axis=-1, keepdims=True)                           # (TB, 1)
        p = jnp.exp(e - m)                                               # (TB, S)
        denom = jnp.sum(p, axis=-1, keepdims=True)                       # (TB, 1)
        attn = p * pl.reciprocal(denom, approx=True)                     # (TB, S)

        # pooled[b, h] = sum_s attn[b, s] * h[b, s, h]  — mul + sublane reduce.
        pooled = jnp.sum(attn[:, :, None] * h, axis=1)                   # (TB, H)

        # Final ReLU.
        out_ref[...] = jnp.maximum(pooled, 0.0).astype(out_ref.dtype)

    return kernel


def _pick_batch_tile(B, S, H, itemsize, target_rows=256, max_tile_bytes=4 << 20):
    """Largest divisor of B with TB*S ~ target MXU rows and a modest x tile."""
    rows_cap = max(1, target_rows // max(S, 1))
    bytes_cap = max(1, max_tile_bytes // max(S * H * itemsize, 1))
    cap = max(1, min(B, rows_cap, bytes_cap))
    tb = 1
    for d in range(1, cap + 1):
        if B % d == 0:
            tb = d
    return tb


def global_attention_layer(words_emb, weight, bias, a_vec, alpha=0.2):
    """
    words_emb: (B, S, H)
    weight:    (H, H)  nn.Linear weight (out, in) — PyTorch convention
    bias:      (H,)
    a_vec:     (H,)    attention vector (torch shape (H, 1), squeezed)
    returns:   (B, H)  float32
    """
    B, S, H = words_emb.shape
    itemsize = jnp.dtype(words_emb.dtype).itemsize
    TB = _pick_batch_tile(B, S, H, itemsize)

    # Hoist the weight transpose out of the kernel; store it bf16 (f32 accum
    # on the MXU keeps accuracy; halves VMEM/DMA for the invariant operand).
    w_t = jnp.asarray(weight.T, dtype=jnp.bfloat16)            # (H_in, H_out)
    bias2d = bias.reshape(1, H).astype(jnp.float32)
    a2d = a_vec.reshape(1, H).astype(jnp.float32)

    # VMEM budget: double-buffered tiles + f32 in-kernel intermediates.
    tile_bytes = (2 * TB * S * H * itemsize      # x tile
                  + 2 * H * H * 2                # bf16 weight
                  + 2 * 2 * H * 4                # bias + a rows
                  + 2 * TB * H * 4               # output tile
                  + 6 * TB * S * H * 4)          # h / products / exp intermediates
    vmem_limit = int(min(64 << 20, max(32 << 20, 2 * tile_bytes)))

    # TODO(synk): single-buffer the grid-invariant weight/bias/a via
    # pipeline_mode=pl.Buffered(1) and add a flash-style sequence grid axis
    # (online softmax, "arbitrary" semantics) once S is large enough that the
    # (TB, S, H) tile no longer fits comfortably in v7x's 64 MiB VMEM.
    return pl.pallas_call(
        _global_attention_kernel(alpha),
        out_shape=jax.ShapeDtypeStruct((B, H), jnp.float32),
        grid_spec=pltpu.PrefetchScalarGridSpec(
            num_scalar_prefetch=0,
            grid=(B // TB,),
            in_specs=[
                pl.BlockSpec((TB, S, H), lambda i: (i, 0, 0)),   # words_emb tile
                pl.BlockSpec((H, H), lambda i: (0, 0)),          # W.T (bf16), invariant
                pl.BlockSpec((1, H), lambda i: (0, 0)),          # bias, invariant
                pl.BlockSpec((1, H), lambda i: (0, 0)),          # a, invariant
            ],
            out_specs=pl.BlockSpec((TB, H), lambda i: (i, 0)),
        ),
        compiler_params=pltpu.CompilerParams(
            dimension_semantics=("parallel",),
            vmem_limit_bytes=vmem_limit),
    )(words_emb, w_t, bias2d, a2d)


def _reference(words_emb, weight, bias, a_vec, alpha):
    # Pure-JAX (f32) reference mirroring the PyTorch forward exactly.
    h = jnp.einsum("bsh,oh->bso", words_emb, weight) + bias          # Linear
    e = jnp.einsum("bsh,h->bs", h, a_vec)                            # (B, S)
    e = jnp.where(e > 0, e, alpha * e)                               # LeakyReLU
    attn = jax.nn.softmax(e, axis=1)                                 # softmax dim=1
    pooled = jnp.einsum("bs,bsh->bh", attn, h)                       # attention @ h
    return jnp.maximum(pooled, 0.0)                                  # ReLU


if __name__ == "__main__":
    B, S, H = 2, 8, 32
    alpha = 0.2

    key = jax.random.PRNGKey(0)
    k_x, k_w, k_b, k_a = jax.random.split(key, 4)

    words_emb = jax.random.normal(k_x, (B, S, H), dtype=jnp.float32)

    # Deterministic parameter init (shapes from nn.Linear(H, H) and a: (H, 1)).
    # nn.Linear default: uniform(-1/sqrt(H), 1/sqrt(H))
    bound = 1.0 / jnp.sqrt(jnp.float32(H))
    weight = jax.random.uniform(k_w, (H, H), jnp.float32, -bound, bound)
    bias = jax.random.uniform(k_b, (H,), jnp.float32, -bound, bound)
    # xavier_uniform_(a, gain=1.414): limit = gain * sqrt(6 / (fan_in + fan_out))
    limit = 1.414 * jnp.sqrt(6.0 / (H + 1))
    a_vec = jax.random.uniform(k_a, (H,), jnp.float32, -limit, limit)

    out = global_attention_layer(words_emb, weight, bias, a_vec, alpha)
    out = jax.block_until_ready(out)

    ref = _reference(words_emb, weight, bias, a_vec, alpha)
    assert out.shape == (B, H)
    err = jnp.max(jnp.abs(out - ref))
    # bf16 MXU operands + approx reciprocal -> compare with a loose tolerance.
    assert jnp.allclose(out, ref, atol=3e-2, rtol=3e-2), f"max abs err = {err}"

    print("KERNEL_OK")
</pallas_src>

<mosaic_0001>
module attributes {stable_mosaic.version = 11 : i64} {
  func.func @kernel(%arg0: i32, %arg1: memref<2x8x32xf32, #tpu.memory_space<vmem>>, %arg2: memref<32x32xbf16, #tpu.memory_space<vmem>>, %arg3: memref<1x32xf32, #tpu.memory_space<vmem>>, %arg4: memref<1x32xf32, #tpu.memory_space<vmem>>, %arg5: memref<2x32xf32, #tpu.memory_space<vmem>>) attributes {dimension_semantics = [#tpu.dimension_semantics<parallel>], iteration_bounds = array<i64: 1>, scalar_prefetch = 0 : i64, scratch_operands = 0 : i64, tpu.core_type = #tpu.core_type<tc>, window_params = [{transform_indices = @transform_0, window_bounds = array<i64: 2, 8, 32>}, {pipeline_mode = #tpu.pipeline_mode<synchronous>, transform_indices = @transform_1, window_bounds = array<i64: 32, 32>}, {pipeline_mode = #tpu.pipeline_mode<synchronous>, transform_indices = @transform_2, window_bounds = array<i64: 1, 32>}, {pipeline_mode = #tpu.pipeline_mode<synchronous>, transform_indices = @transform_3, window_bounds = array<i64: 1, 32>}, {transform_indices = @transform_4, window_bounds = array<i64: 2, 32>}]} {
    %c0 = arith.constant 0 : index
    %c0_0 = arith.constant 0 : index
    %c0_1 = arith.constant 0 : index
    %0 = vector.load %arg1[%c0, %c0_0, %c0_1] : memref<2x8x32xf32, #tpu.memory_space<vmem>>, vector<2x8x32xf32>
    %1 = vector.shape_cast %0 : vector<2x8x32xf32> to vector<16x32xf32>
    %2 = arith.truncf %1 : vector<16x32xf32> to vector<16x32xbf16>
    %c0_2 = arith.constant 0 : index
    %c0_3 = arith.constant 0 : index
    %3 = vector.load %arg2[%c0_2, %c0_3] : memref<32x32xbf16, #tpu.memory_space<vmem>>, vector<32x32xbf16>
    %c0_4 = arith.constant 0 : index
    %c0_5 = arith.constant 0 : index
    %4 = vector.load %arg3[%c0_4, %c0_5] : memref<1x32xf32, #tpu.memory_space<vmem>>, vector<1x32xf32>
    %cst = arith.constant dense<0.000000e+00> : vector<16x32xf32>
    %5 = tpu.matmul %2, %3, %cst {dimension_numbers = #tpu.dot_dimension_numbers<[1], [0], [0], [1], [0, 0, 1, 1], [], []>} : vector<16x32xbf16>, vector<32x32xbf16>, vector<16x32xf32> -> vector<16x32xf32>
    %6 = vector.broadcast %4 : vector<1x32xf32> to vector<16x32xf32>
    %7 = arith.addf %5, %6 : vector<16x32xf32>
    %8 = vector.shape_cast %7 : vector<16x32xf32> to vector<2x8x32xf32>
    %c0_6 = arith.constant 0 : index
    %c0_7 = arith.constant 0 : index
    %9 = vector.load %arg4[%c0_6, %c0_7] : memref<1x32xf32, #tpu.memory_space<vmem>>, vector<1x32xf32>
    %10 = vector.shape_cast %9 : vector<1x32xf32> to vector<1x1x32xf32>
    %11 = vector.broadcast %10 : vector<1x1x32xf32> to vector<2x8x32xf32>
    %12 = arith.mulf %8, %11 : vector<2x8x32xf32>
    %cst_8 = arith.constant dense<0.000000e+00> : vector<2x8xf32>
    %13 = vector.multi_reduction <add>, %12, %cst_8 [2] : vector<2x8x32xf32> to vector<2x8xf32>
    %cst_9 = arith.constant 0.000000e+00 : f32
    %14 = vector.broadcast %cst_9 : f32 to vector<2x8xf32>
    %15 = arith.cmpf ogt, %13, %14 : vector<2x8xf32>
    %cst_10 = arith.constant 2.000000e-01 : f32
    %16 = vector.broadcast %cst_10 : f32 to vector<2x8xf32>
    %17 = arith.mulf %16, %13 : vector<2x8xf32>
    %18 = arith.select %15, %13, %17 : vector<2x8xi1>, vector<2x8xf32>
    %cst_11 = arith.constant dense<0xFF800000> : vector<2xf32>
    %19 = vector.multi_reduction <maximumf>, %18, %cst_11 [1] : vector<2x8xf32> to vector<2xf32>
    %20 = vector.shape_cast %19 : vector<2xf32> to vector<2x1xf32>
    %21 = vector.broadcast %20 : vector<2x1xf32> to vector<2x8xf32>
    %22 = arith.subf %18, %21 : vector<2x8xf32>
    %23 = math.exp %22 : vector<2x8xf32>
    %cst_12 = arith.constant dense<0.000000e+00> : vector<2xf32>
    %24 = vector.multi_reduction <add>, %23, %cst_12 [1] : vector<2x8xf32> to vector<2xf32>
    %25 = vector.shape_cast %24 : vector<2xf32> to vector<2x1xf32>
    %26 = tpu.reciprocal %25 {approx = true} : vector<2x1xf32> -> vector<2x1xf32>
    %27 = vector.broadcast %26 : vector<2x1xf32> to vector<2x8xf32>
    %28 = arith.mulf %23, %27 : vector<2x8xf32>
    %29 = vector.shape_cast %28 : vector<2x8xf32> to vector<2x8x1xf32>
    %30 = vector.broadcast %29 : vector<2x8x1xf32> to vector<2x8x32xf32>
    %31 = arith.mulf %30, %8 : vector<2x8x32xf32>
    %cst_13 = arith.constant dense<0.000000e+00> : vector<2x32xf32>
    %32 = vector.multi_reduction <add>, %31, %cst_13 [1] : vector<2x8x32xf32> to vector<2x32xf32>
    %cst_14 = arith.constant 0.000000e+00 : f32
    %33 = vector.broadcast %cst_14 : f32 to vector<2x32xf32>
    %34 = arith.maximumf %32, %33 : vector<2x32xf32>
    %c0_15 = arith.constant 0 : index
    %c0_16 = arith.constant 0 : index
    %35 = vector.load %arg5[%c0_15, %c0_16] : memref<2x32xf32, #tpu.memory_space<vmem>>, vector<2x32xf32>
    tpu.vector_store %arg5[%c0_15, %c0_16], %34 {strides = array<i32>} : memref<2x32xf32, #tpu.memory_space<vmem>>, vector<2x32xf32>,
    return
  }
  func.func @transform_0(%arg0: i32) -> (i32, i32, i32) {
    %c0_i32 = arith.constant 0 : i32
    %c0_i32_0 = arith.constant 0 : i32
    %c0_i32_1 = arith.constant 0 : i32
    return %arg0, %c0_i32, %c0_i32_0 : i32, i32, i32
  }
  func.func @transform_1(%arg0: i32) -> (i32, i32) {
    %c0_i32 = arith.constant 0 : i32
    %c0_i32_0 = arith.constant 0 : i32
    %c0_i32_1 = arith.constant 0 : i32
    return %c0_i32, %c0_i32_0 : i32, i32
  }
  func.func @transform_2(%arg0: i32) -> (i32, i32) {
    %c0_i32 = arith.constant 0 : i32
    %c0_i32_0 = arith.constant 0 : i32
    %c0_i32_1 = arith.constant 0 : i32
    return %c0_i32, %c0_i32_0 : i32, i32
  }
  func.func @transform_3(%arg0: i32) -> (i32, i32) {
    %c0_i32 = arith.constant 0 : i32
    %c0_i32_0 = arith.constant 0 : i32
    %c0_i32_1 = arith.constant 0 : i32
    return %c0_i32, %c0_i32_0 : i32, i32
  }
  func.func @transform_4(%arg0: i32) -> (i32, i32) {
    %c0_i32 = arith.constant 0 : i32
    %c0_i32_0 = arith.constant 0 : i32
    return %arg0, %c0_i32 : i32, i32
  }
}

</mosaic_0001>

<llo_original>
// kernel: tpu_custom_call.1
$region0: #{tpu_custom_call.1}
  #allocation0 [shape = 'u32[]', space=smem, size = 0x4, offset = 0x4, fixed_abs, tag = 'smem constant byte address 0x4 - core index']
  #allocation1 [shape = 'u32[72,128]{1,0:T(1,128)}', space=vmem, size = 0x9000, scoped, tag = 'internal scratch']
  %s0 = inlined_call_operand.hbm [shape: f32[2,8,32], index: 0, kind: input, shape index: {}]
  %s1 = inlined_call_operand.hbm [shape: bf16[32,32], index: 1, kind: input, shape index: {}]
  %s2 = inlined_call_operand.vmem [shape: f32[1,32], index: 2, kind: input, shape index: {}]
  %s3 = inlined_call_operand.vmem [shape: f32[1,32], index: 3, kind: input, shape index: {}]
  %s4 = inlined_call_operand.hbm [shape: f32[2,32], index: 4, kind: output, shape index: {}]
  %s5 = sld [smem:[#allocation0]]
  $region34: #{tpu_custom_call.1} parent=0
    _
  %s7 = ssub.s32 1, %s5
  %s8 = scalar_select 0, %s7, %s5
  $region1: #{tpu_custom_call.1} parent=0
    #allocation2 [shape = 'u8[8192]{0}', space=vmem, size = 0x2000, scoped, tag = 'input window, operand 0, single buffered']
    #allocation3 [shape = 's32[1]{0}', space=sflag, size = 0x4, scoped, tag = 'scoped memory for tpu_custom_call.1']
    #allocation4 [shape = 's32[1]{0}', space=sflag, size = 0x4, scoped, tag = 'scoped memory for tpu_custom_call.1']
    #allocation5 [shape = 'u8[8192]{0}', space=vmem, size = 0x2000, scoped, tag = 'input window, operand 1, single buffered']
    #allocation6 [shape = 's32[1]{0}', space=sflag, size = 0x4, scoped, tag = 'scoped memory for tpu_custom_call.1']
    #allocation7 [shape = 'u8[1024]{0}', space=vmem, size = 0x400, scoped, tag = 'output window, operand 0, single buffered']
    %9 = vsyncpa [#allocation3], 0
    %10 = vsyncpa [#allocation6], 0
    %11 = vsyncpa [#allocation4], 0
    // Predicated region
    $region2: #{tpu_custom_call.1} parent=1 // pred_check
      _
    $region3: #{tpu_custom_call.1} parent=1 // pred_check_branch
      %13 = sbr.rel (0) target = $region5
    $region4: #{tpu_custom_call.1} parent=1 // pred_region
      %15 = vsyncadd [#allocation3], 0
      %s16 = sshll.u32 %s0, 4
      %s17 = int_to_ptr.hbm [resolvable:$true] %s16
      %s18 = sshll.u32 [#allocation2], 4
      %s19 = int_to_ptr.vmem [resolvable:$true] %s18
      %24 = dma.hbm_to_vmem [thread:$0]  %s17, 256, %s19, [#allocation3], 128, 128, 8
    $region5: #{tpu_custom_call.1} parent=1 // pred_fallthru
      _
    // Predicated region
    $region6: #{tpu_custom_call.1} parent=1 // pred_check
      _
    $region7: #{tpu_custom_call.1} parent=1 // pred_check_branch
      %26 = sbr.rel (0) target = $region9
    $region8: #{tpu_custom_call.1} parent=1 // pred_region
      %28 = vsyncadd [#allocation6], 0
      %s29 = sshll.u32 %s1, 4
      %s30 = int_to_ptr.hbm [resolvable:$true] %s29
      %s31 = sshll.u32 [#allocation5], 4
      %s32 = int_to_ptr.vmem [resolvable:$true] %s31
      %37 = dma.hbm_to_vmem [thread:$0]  %s30, 256, %s32, [#allocation6], 64, 64, 4
    $region9: #{tpu_custom_call.1} parent=1 // pred_fallthru
      _
    // Predicated region
    $region10: #{tpu_custom_call.1} parent=1 // pred_check
      _
    $region11: #{tpu_custom_call.1} parent=1 // pred_check_branch
      %39 = sbr.rel (0) target = $region13
    $region12: #{tpu_custom_call.1} parent=1 // pred_region
      _
    $region13: #{tpu_custom_call.1} parent=1 // pred_fallthru
      _
    // Predicated region
    $region14: #{tpu_custom_call.1} parent=1 // pred_check
      _
    $region15: #{tpu_custom_call.1} parent=1 // pred_check_branch
      %41 = sbr.rel (0) target = $region17
    $region16: #{tpu_custom_call.1} parent=1 // pred_region
      _
    $region17: #{tpu_custom_call.1} parent=1 // pred_fallthru
      _
    // Predicated region
    $region18: #{tpu_custom_call.1} parent=1 // pred_check
      _
    $region19: #{tpu_custom_call.1} parent=1 // pred_check_branch
      %43 = sbr.rel (0) target = $region21
    $region20: #{tpu_custom_call.1} parent=1 // pred_region
      %45 = dma.done [#allocation3], 256
    $region21: #{tpu_custom_call.1} parent=1 // pred_fallthru
      _
    // Predicated region
    $region22: #{tpu_custom_call.1} parent=1 // pred_check
      _
    $region23: #{tpu_custom_call.1} parent=1 // pred_check_branch
      %47 = sbr.rel (0) target = $region25
    $region24: #{tpu_custom_call.1} parent=1 // pred_region
      %49 = dma.done [#allocation6], 256
    $region25: #{tpu_custom_call.1} parent=1 // pred_fallthru
      _
    %v51 = vld [vmem:[#allocation2] sm:$0xff]
    %v52 = vld [vmem:[#allocation2 + $0x8] sm:$0xff]
    %v53 = vpack.c.bf16 %v52, %v51
    %v54 = vld [vmem:[#allocation5] sm:$0xf]
    %v55 = vld [vmem:[#allocation5 + $0x4] sm:$0xf]
    %v56 = vld [vmem:[#allocation5 + $0x8] sm:$0xf]
    %v57 = vld [vmem:[#allocation5 + $0xc] sm:$0xf]
    %v58 = vld [vmem:[%s2] sm:$0x1]
    %v60 = vperm.slane %v58, 0
    %v66 = vunpack.c.l.b16 %v54
    %v67 = vunpack.c.l.b16 %v55
    %v68 = vunpack.c.l.b16 %v56
    %v69 = vunpack.c.l.b16 %v57
    %v70 = vpack.c.b16 %v67, %v66
    %v71 = vpack.c.b16 %v69, %v68
    %vm74 = vcmask 261120
    %v76 = vsel %vm74, %v53, 0
    %78 = vmatpush.bf16.msra.mxu0 0
    %79 = vmatpush.bf16.msra.mxu0 0
    %80 = vmatpush.bf16.msra.mxu0 0
    %81 = vmatpush.bf16.msra.mxu0 0
    %82 = vmatpush.bf16.msra.mxu0 0
    %83 = vmatpush.bf16.msra.mxu0 0
    %84 = vmatpush.bf16.msra.mxu0 %v71
    %85 = vmatpush.bf16.msra.mxu0 %v70
    %86 = vmatmul.bf16.gmra.mxu0 %v76
    %v87 = vpop.f32.mrf.mxu0
    %v88 = vadd.f32 %v60, %v87
    %v89 = vpop.f32.mrf.mxu0
    %v90 = vadd.f32 %v60, %v89
    %91 = vdwg.mxu0
    %v92 = vld [vmem:[%s3] sm:$0x1]
    %v94 = vperm.slane %v92, 0
    %v96 = vmul.f32 %v88, %v94
    %v97 = vmul.f32 %v90, %v94
    %v98 = vsel %vm74, %v96, 0.0
    %99 = vadd.xlane.f32.xlu0 %v98
    %v100 = vpop.xlane.xlu0 %99
    %v101 = vsel %vm74, %v97, 0.0
    %102 = vadd.xlane.f32.xlu0 %v101
    %v103 = vpop.xlane.xlu0 %102
    %vm104 = vcmp.gt.f32.partialorder %v100, 0.0
    %vm105 = vcmp.gt.f32.partialorder %v103, 0.0
    %v106 = vmul.f32 %v100, 0.2
    %v107 = vmul.f32 %v103, 0.2
    %v108 = vsel %vm104, %v100, %v106
    %v109 = vsel %vm105, %v103, %v107
    %v112 = vlaneseq
    %v113 = vand.u32 %v112, 127
    %v114 = vperm.slane %v108, %v113
    %v115 = vperm.slane %v109, %v113
    %vm116 = vcmask 1041409
    %v117 = vsel %vm116, %v115, %v114
    %vm119 = vcmask 58368
    %v120 = vsel %vm119, %v117, -inf
    %121 = vmax.xlane.f32.xlu0 %v120
    %v122 = vpop.xlane.xlu0 %121
    %v124 = vperm.slane %v122, 0
    %v125 = vperm.slane %v122, 1
    %v128 = vsub.f32 %v108, %v124
    %v129 = vsub.f32 %v109, %v125
    %v130 = vmul.f32 %v128, 1.442695
    %v131 = vpow.pop %v130
    %v132 = vmul.f32 %v129, 1.442695
    %v133 = vpow.pop %v132
    %136 = vset.pattern.permute.xlu0 0
    %137 = vperm.xlu0 %136, %v131
    %v138 = vpop.permute.xlu0 %137
    %139 = vset.pattern.permute.xlu0 0
    %140 = vperm.xlu0 %139, %v133
    %v141 = vpop.permute.xlu0 %140
    %v142 = vperm.slane %v138, %v113
    %v143 = vperm.slane %v141, %v113
    %v144 = vsel %vm116, %v143, %v142
    %v146 = vsel %vm119, %v144, 0.0
    %147 = vadd.xlane.f32.xlu0 %v146
    %v148 = vpop.xlane.xlu0 %147
    %v149 = vrcp.pop %v148
    %v151 = vperm.slane %v149, 0
    %v152 = vperm.slane %v149, 1
    %v155 = vmul.f32 %v131, %v151
    %v156 = vmul.f32 %v133, %v152
    %158 = vset.pattern.permute.xlu0 0
    %159 = vperm.xlu0 %158, %v155
    %v160 = vpop.permute.xlu0 %159
    %163 = vset.pattern.permute.xlu0 0
    %164 = vperm.xlu0 %163, %v156
    %v165 = vpop.permute.xlu0 %164
    %v167 = vmul.f32 %v160, %v88
    %v168 = vmul.f32 %v165, %v90
    %v169 = vsel %vm74, %v167, 0.0
    %v170 = vrot.slane %v169, 4
    %v171 = vadd.f32 %v169, %v170
    %v172 = vrot.slane %v171, 2
    %v173 = vadd.f32 %v171, %v172
    %v174 = vrot.slane %v173, 1
    %v175 = vadd.f32 %v173, %v174
    %v176 = vsel %vm74, %v168, 0.0
    %v177 = vrot.slane %v176, 4
    %v178 = vadd.f32 %v176, %v177
    %v179 = vrot.slane %v178, 2
    %v180 = vadd.f32 %v178, %v179
    %v181 = vrot.slane %v180, 1
    %v182 = vadd.f32 %v180, %v181
    %v183 = vmax.f32 %v175, 0.0
    %v184 = vmax.f32 %v182, 0.0
    %v187 = vsel %vm116, %v184, %v183
    %vm189 = vcmask 254976
    %190 = vst.msk [vmem:[#allocation7] sm:$0x3] %vm189, %v187
    // Predicated region
    $region26: #{tpu_custom_call.1} parent=1 // pred_check
      _
    $region27: #{tpu_custom_call.1} parent=1 // pred_check_branch
      %192 = sbr.rel (0) target = $region29
    $region28: #{tpu_custom_call.1} parent=1 // pred_region
      %194 = vsyncadd [#allocation4], 0
      %s196 = sshll.u32 [#allocation7], 4
      %s197 = int_to_ptr.vmem [resolvable:$true] %s196
      %s198 = sshll.u32 %s4, 4
      %s199 = int_to_ptr.hbm [resolvable:$true] %s198
      %201 = dma.vmem_to_hbm [thread:$0]  %s197, 32, %s199, [#allocation4]
    $region29: #{tpu_custom_call.1} parent=1 // pred_fallthru
      _
    // Predicated region
    $region30: #{tpu_custom_call.1} parent=1 // pred_check
      _
    $region31: #{tpu_custom_call.1} parent=1 // pred_check_branch
      %203 = sbr.rel (0) target = $region33
    $region32: #{tpu_custom_call.1} parent=1 // pred_region
      %205 = dma.done [#allocation4], 32
    $region33: #{tpu_custom_call.1} parent=1 // pred_fallthru
      _
    %206 = vsyncpa [#allocation3], 1
    %207 = vsyncpa [#allocation6], 1
    %208 = vsyncpa [#allocation4], 1

</llo_original>
